<compile_context>
chip_gen: v6e
topology: v6e:2x2x1
jax: 0.10.0
libtpu: 0.0.40
codegen_flags: <defaults>
</compile_context>

<pallas_src>
import functools

import jax
import jax.numpy as jnp
from jax.experimental import pallas as pl
from jax.experimental.pallas import tpu as pltpu


def _round_up(x, m):
    return ((x + m - 1) // m) * m


# ----------------------------------------------------------------------------
# Fused MLP kernel: all layers on one batch tile, activation kept in VMEM.
# ----------------------------------------------------------------------------
def _mlp_fused_kernel(x_ref, w_ref, b_ref, o_ref, h_ref, *, n_layers):
    # x_ref: (TB, P)        padded input tile
    # w_ref: (L, P, P)      stacked zero-padded weights (in, out) layout
    # b_ref: (L, 1, P)      stacked zero-padded biases
    # o_ref: (TB, P)        padded output tile (lane-dense)
    # h_ref: (TB, P) f32    VMEM scratch holding the inter-layer activation
    h_ref[...] = x_ref[...].astype(jnp.float32)
    # Static Python loop: layer count is small and known at trace time.
    for l in range(n_layers - 1):
        y = jnp.dot(h_ref[...], w_ref[l], preferred_element_type=jnp.float32)
        y = y + b_ref[l]                     # (1, P) broadcasts over sublanes
        h_ref[...] = jnp.maximum(y, 0.0)     # ReLU (dropout is identity/eval)
    y = jnp.dot(h_ref[...], w_ref[n_layers - 1],
                preferred_element_type=jnp.float32)
    o_ref[...] = (y + b_ref[n_layers - 1]).astype(o_ref.dtype)


def psat_dl_forward(x, params, *, batch_tile=None):
    """Forward pass of PSAT_DL (inference mode) as one fused Pallas kernel.

    params: list of (w, b) with w shaped (in_features, out_features), i.e. the
    transpose of PyTorch's nn.Linear.weight, so each layer is y = x @ W + b.
    """
    n_layers = len(params)
    B, n_input = x.shape
    n_output = params[-1][0].shape[1]

    # Common lane-dense padded width for every layer (multiple of 128).
    dims = [n_input] + [w.shape[1] for (w, _) in params]
    P = max(_round_up(d, 128) for d in dims)

    # Stack + zero-pad weights/biases so padded lanes contribute exactly zero.
    w_stack = jnp.zeros((n_layers, P, P), jnp.float32)
    b_stack = jnp.zeros((n_layers, 1, P), jnp.float32)
    for l, (w, b) in enumerate(params):
        din, dout = w.shape
        w_stack = w_stack.at[l, :din, :dout].set(w.astype(jnp.float32))
        b_stack = b_stack.at[l, 0, :dout].set(b.astype(jnp.float32))

    # Batch tile: multiple of 8 sublanes, large enough to amortize per-step
    # overhead, small enough that 2x double-buffered (tile, P) f32 tiles plus
    # resident weights fit the scoped VMEM limit on all generations (v7x incl).
    if batch_tile is None:
        batch_tile = min(512, _round_up(B, 8))
    Bp = _round_up(B, batch_tile)

    # Pad input to (Bp, P); padded rows/lanes are zero.
    x_pad = jnp.zeros((Bp, P), jnp.float32).at[:B, :n_input].set(
        x.astype(jnp.float32))

    flops = 2 * Bp * n_layers * P * P
    bytes_accessed = 4 * (x_pad.size + w_stack.size + b_stack.size + Bp * P)

    kernel = functools.partial(_mlp_fused_kernel, n_layers=n_layers)
    out = pl.pallas_call(
        kernel,
        out_shape=jax.ShapeDtypeStruct((Bp, P), jnp.float32),
        grid_spec=pltpu.PrefetchScalarGridSpec(
            num_scalar_prefetch=0,
            grid=(Bp // batch_tile,),
            in_specs=[
                pl.BlockSpec((batch_tile, P), lambda i: (i, 0)),
                # Weights/biases: full-array, VMEM-resident across the grid.
                pl.BlockSpec((n_layers, P, P), lambda i: (0, 0, 0)),
                pl.BlockSpec((n_layers, 1, P), lambda i: (0, 0, 0)),
            ],
            out_specs=pl.BlockSpec((batch_tile, P), lambda i: (i, 0)),
            scratch_shapes=[pltpu.VMEM((batch_tile, P), jnp.float32)],
        ),
        compiler_params=pltpu.CompilerParams(
            dimension_semantics=("parallel",),
        ),
        cost_estimate=pl.CostEstimate(
            flops=flops, transcendentals=0, bytes_accessed=bytes_accessed),
    )(x_pad, w_stack, b_stack)

    # Slice back to the true (batch, N_Output) shape.
    return out[:B, :n_output]


# ----------------------------------------------------------------------------
# Parameter construction (deterministic, mimics nn.Linear default init scale).
# ----------------------------------------------------------------------------
def init_psat_dl_params(key, n_input, n_output, n_hidden, n_layer):
    params = []
    dims = [(n_input, n_hidden)] + [(n_hidden, n_hidden)] * (n_layer - 1) + \
           [(n_hidden, n_output)]
    for (din, dout) in dims:
        key, kw, kb = jax.random.split(key, 3)
        bound = 1.0 / jnp.sqrt(jnp.float32(din))
        w = jax.random.uniform(kw, (din, dout), jnp.float32, -bound, bound)
        b = jax.random.uniform(kb, (dout,), jnp.float32, -bound, bound)
        params.append((w, b))
    return params


# ----------------------------------------------------------------------------
# Pure-JAX reference for correctness checking.
# ----------------------------------------------------------------------------
def psat_dl_reference(x, params):
    h = x
    n_layers = len(params)
    for idx, (w, b) in enumerate(params):
        h = h @ w + b
        if idx != n_layers - 1:
            h = jnp.maximum(h, 0.0)
    return h


if __name__ == "__main__":
    # Small shapes consistent with the module's forward.
    N_Input, N_Output, N_Hidden, N_Layer = 32, 4, 64, 3
    batch = 8

    key = jax.random.PRNGKey(0)
    key, kx = jax.random.split(key)
    x = jax.random.normal(kx, (batch, N_Input), jnp.float32)

    params = init_psat_dl_params(key, N_Input, N_Output, N_Hidden, N_Layer)

    out = psat_dl_forward(x, params)
    out = jax.block_until_ready(out)

    ref = psat_dl_reference(x, params)
    assert out.shape == (batch, N_Output), out.shape
    assert jnp.allclose(out, ref, atol=1e-4, rtol=1e-4), (
        "mismatch vs reference")

    print("KERNEL_OK")
</pallas_src>

<mosaic_0001>
module attributes {stable_mosaic.version = 11 : i64} {
  func.func @_mlp_fused_kernel(%arg0: i32, %arg1: memref<8x128xf32, #tpu.memory_space<vmem>>, %arg2: memref<4x128x128xf32, #tpu.memory_space<vmem>>, %arg3: memref<4x1x128xf32, #tpu.memory_space<vmem>>, %arg4: memref<8x128xf32, #tpu.memory_space<vmem>>, %arg5: memref<8x128xf32, #tpu.memory_space<vmem>>) attributes {dimension_semantics = [#tpu.dimension_semantics<parallel>], iteration_bounds = array<i64: 1>, scalar_prefetch = 0 : i64, scratch_operands = 1 : i64, tpu.core_type = #tpu.core_type<tc>, window_params = [{transform_indices = @transform_0, window_bounds = array<i64: 8, 128>}, {pipeline_mode = #tpu.pipeline_mode<synchronous>, transform_indices = @transform_1, window_bounds = array<i64: 4, 128, 128>}, {pipeline_mode = #tpu.pipeline_mode<synchronous>, transform_indices = @transform_2, window_bounds = array<i64: 4, 1, 128>}, {transform_indices = @transform_3, window_bounds = array<i64: 8, 128>}]} {
    %c0 = arith.constant 0 : index
    %c0_0 = arith.constant 0 : index
    %0 = vector.load %arg1[%c0, %c0_0] : memref<8x128xf32, #tpu.memory_space<vmem>>, vector<8x128xf32>
    %c0_1 = arith.constant 0 : index
    %c0_2 = arith.constant 0 : index
    %1 = vector.load %arg5[%c0_1, %c0_2] : memref<8x128xf32, #tpu.memory_space<vmem>>, vector<8x128xf32>
    tpu.vector_store %arg5[%c0_1, %c0_2], %0 {strides = array<i32>} : memref<8x128xf32, #tpu.memory_space<vmem>>, vector<8x128xf32>,
    %c0_3 = arith.constant 0 : index
    %c0_4 = arith.constant 0 : index
    %2 = vector.load %arg5[%c0_3, %c0_4] : memref<8x128xf32, #tpu.memory_space<vmem>>, vector<8x128xf32>
    %c0_5 = arith.constant 0 : index
    %c0_6 = arith.constant 0 : index
    %c0_7 = arith.constant 0 : index
    %3 = vector.load %arg2[%c0_5, %c0_6, %c0_7] : memref<4x128x128xf32, #tpu.memory_space<vmem>>, vector<1x128x128xf32>
    %4 = vector.shape_cast %3 : vector<1x128x128xf32> to vector<128x128xf32>
    %cst = arith.constant dense<0.000000e+00> : vector<8x128xf32>
    %5 = tpu.matmul %2, %4, %cst {dimension_numbers = #tpu.dot_dimension_numbers<[1], [0], [0], [1], [0, 0, 1, 1], [], []>} : vector<8x128xf32>, vector<128x128xf32>, vector<8x128xf32> -> vector<8x128xf32>
    %c0_8 = arith.constant 0 : index
    %c0_9 = arith.constant 0 : index
    %c0_10 = arith.constant 0 : index
    %6 = vector.load %arg3[%c0_8, %c0_9, %c0_10] : memref<4x1x128xf32, #tpu.memory_space<vmem>>, vector<1x1x128xf32>
    %7 = vector.shape_cast %6 : vector<1x1x128xf32> to vector<1x128xf32>
    %8 = vector.broadcast %7 : vector<1x128xf32> to vector<8x128xf32>
    %9 = arith.addf %5, %8 : vector<8x128xf32>
    %cst_11 = arith.constant 0.000000e+00 : f32
    %10 = vector.broadcast %cst_11 : f32 to vector<8x128xf32>
    %11 = arith.maximumf %9, %10 : vector<8x128xf32>
    %c0_12 = arith.constant 0 : index
    %c0_13 = arith.constant 0 : index
    %12 = vector.load %arg5[%c0_12, %c0_13] : memref<8x128xf32, #tpu.memory_space<vmem>>, vector<8x128xf32>
    tpu.vector_store %arg5[%c0_12, %c0_13], %11 {strides = array<i32>} : memref<8x128xf32, #tpu.memory_space<vmem>>, vector<8x128xf32>,
    %c0_14 = arith.constant 0 : index
    %c0_15 = arith.constant 0 : index
    %13 = vector.load %arg5[%c0_14, %c0_15] : memref<8x128xf32, #tpu.memory_space<vmem>>, vector<8x128xf32>
    %c1 = arith.constant 1 : index
    %c0_16 = arith.constant 0 : index
    %c0_17 = arith.constant 0 : index
    %14 = vector.load %arg2[%c1, %c0_16, %c0_17] : memref<4x128x128xf32, #tpu.memory_space<vmem>>, vector<1x128x128xf32>
    %15 = vector.shape_cast %14 : vector<1x128x128xf32> to vector<128x128xf32>
    %cst_18 = arith.constant dense<0.000000e+00> : vector<8x128xf32>
    %16 = tpu.matmul %13, %15, %cst_18 {dimension_numbers = #tpu.dot_dimension_numbers<[1], [0], [0], [1], [0, 0, 1, 1], [], []>} : vector<8x128xf32>, vector<128x128xf32>, vector<8x128xf32> -> vector<8x128xf32>
    %c1_19 = arith.constant 1 : index
    %c0_20 = arith.constant 0 : index
    %c0_21 = arith.constant 0 : index
    %17 = vector.load %arg3[%c1_19, %c0_20, %c0_21] : memref<4x1x128xf32, #tpu.memory_space<vmem>>, vector<1x1x128xf32>
    %18 = vector.shape_cast %17 : vector<1x1x128xf32> to vector<1x128xf32>
    %19 = vector.broadcast %18 : vector<1x128xf32> to vector<8x128xf32>
    %20 = arith.addf %16, %19 : vector<8x128xf32>
    %cst_22 = arith.constant 0.000000e+00 : f32
    %21 = vector.broadcast %cst_22 : f32 to vector<8x128xf32>
    %22 = arith.maximumf %20, %21 : vector<8x128xf32>
    %c0_23 = arith.constant 0 : index
    %c0_24 = arith.constant 0 : index
    %23 = vector.load %arg5[%c0_23, %c0_24] : memref<8x128xf32, #tpu.memory_space<vmem>>, vector<8x128xf32>
    tpu.vector_store %arg5[%c0_23, %c0_24], %22 {strides = array<i32>} : memref<8x128xf32, #tpu.memory_space<vmem>>, vector<8x128xf32>,
    %c0_25 = arith.constant 0 : index
    %c0_26 = arith.constant 0 : index
    %24 = vector.load %arg5[%c0_25, %c0_26] : memref<8x128xf32, #tpu.memory_space<vmem>>, vector<8x128xf32>
    %c2 = arith.constant 2 : index
    %c0_27 = arith.constant 0 : index
    %c0_28 = arith.constant 0 : index
    %25 = vector.load %arg2[%c2, %c0_27, %c0_28] : memref<4x128x128xf32, #tpu.memory_space<vmem>>, vector<1x128x128xf32>
    %26 = vector.shape_cast %25 : vector<1x128x128xf32> to vector<128x128xf32>
    %cst_29 = arith.constant dense<0.000000e+00> : vector<8x128xf32>
    %27 = tpu.matmul %24, %26, %cst_29 {dimension_numbers = #tpu.dot_dimension_numbers<[1], [0], [0], [1], [0, 0, 1, 1], [], []>} : vector<8x128xf32>, vector<128x128xf32>, vector<8x128xf32> -> vector<8x128xf32>
    %c2_30 = arith.constant 2 : index
    %c0_31 = arith.constant 0 : index
    %c0_32 = arith.constant 0 : index
    %28 = vector.load %arg3[%c2_30, %c0_31, %c0_32] : memref<4x1x128xf32, #tpu.memory_space<vmem>>, vector<1x1x128xf32>
    %29 = vector.shape_cast %28 : vector<1x1x128xf32> to vector<1x128xf32>
    %30 = vector.broadcast %29 : vector<1x128xf32> to vector<8x128xf32>
    %31 = arith.addf %27, %30 : vector<8x128xf32>
    %cst_33 = arith.constant 0.000000e+00 : f32
    %32 = vector.broadcast %cst_33 : f32 to vector<8x128xf32>
    %33 = arith.maximumf %31, %32 : vector<8x128xf32>
    %c0_34 = arith.constant 0 : index
    %c0_35 = arith.constant 0 : index
    %34 = vector.load %arg5[%c0_34, %c0_35] : memref<8x128xf32, #tpu.memory_space<vmem>>, vector<8x128xf32>
    tpu.vector_store %arg5[%c0_34, %c0_35], %33 {strides = array<i32>} : memref<8x128xf32, #tpu.memory_space<vmem>>, vector<8x128xf32>,
    %c0_36 = arith.constant 0 : index
    %c0_37 = arith.constant 0 : index
    %35 = vector.load %arg5[%c0_36, %c0_37] : memref<8x128xf32, #tpu.memory_space<vmem>>, vector<8x128xf32>
    %c3 = arith.constant 3 : index
    %c0_38 = arith.constant 0 : index
    %c0_39 = arith.constant 0 : index
    %36 = vector.load %arg2[%c3, %c0_38, %c0_39] : memref<4x128x128xf32, #tpu.memory_space<vmem>>, vector<1x128x128xf32>
    %37 = vector.shape_cast %36 : vector<1x128x128xf32> to vector<128x128xf32>
    %cst_40 = arith.constant dense<0.000000e+00> : vector<8x128xf32>
    %38 = tpu.matmul %35, %37, %cst_40 {dimension_numbers = #tpu.dot_dimension_numbers<[1], [0], [0], [1], [0, 0, 1, 1], [], []>} : vector<8x128xf32>, vector<128x128xf32>, vector<8x128xf32> -> vector<8x128xf32>
    %c3_41 = arith.constant 3 : index
    %c0_42 = arith.constant 0 : index
    %c0_43 = arith.constant 0 : index
    %39 = vector.load %arg3[%c3_41, %c0_42, %c0_43] : memref<4x1x128xf32, #tpu.memory_space<vmem>>, vector<1x1x128xf32>
    %40 = vector.shape_cast %39 : vector<1x1x128xf32> to vector<1x128xf32>
    %41 = vector.broadcast %40 : vector<1x128xf32> to vector<8x128xf32>
    %42 = arith.addf %38, %41 : vector<8x128xf32>
    %c0_44 = arith.constant 0 : index
    %c0_45 = arith.constant 0 : index
    %43 = vector.load %arg4[%c0_44, %c0_45] : memref<8x128xf32, #tpu.memory_space<vmem>>, vector<8x128xf32>
    tpu.vector_store %arg4[%c0_44, %c0_45], %42 {strides = array<i32>} : memref<8x128xf32, #tpu.memory_space<vmem>>, vector<8x128xf32>,
    return
  }
  func.func @transform_0(%arg0: i32) -> (i32, i32) {
    %c0_i32 = arith.constant 0 : i32
    %c0_i32_0 = arith.constant 0 : i32
    return %arg0, %c0_i32 : i32, i32
  }
  func.func @transform_1(%arg0: i32) -> (i32, i32, i32) {
    %c0_i32 = arith.constant 0 : i32
    %c0_i32_0 = arith.constant 0 : i32
    %c0_i32_1 = arith.constant 0 : i32
    %c0_i32_2 = arith.constant 0 : i32
    return %c0_i32, %c0_i32_0, %c0_i32_1 : i32, i32, i32
  }
  func.func @transform_2(%arg0: i32) -> (i32, i32, i32) {
    %c0_i32 = arith.constant 0 : i32
    %c0_i32_0 = arith.constant 0 : i32
    %c0_i32_1 = arith.constant 0 : i32
    %c0_i32_2 = arith.constant 0 : i32
    return %c0_i32, %c0_i32_0, %c0_i32_1 : i32, i32, i32
  }
  func.func @transform_3(%arg0: i32) -> (i32, i32) {
    %c0_i32 = arith.constant 0 : i32
    %c0_i32_0 = arith.constant 0 : i32
    return %arg0, %c0_i32 : i32, i32
  }
}

</mosaic_0001>

<llo_original>
// kernel: tpu_custom_call.1
$region0: #{tpu_custom_call.1}
  #allocation0 [shape = 'u32[]', space=smem, size = 0x4, offset = 0x4, fixed_abs, tag = 'smem constant byte address 0x4 - core index']
  #allocation1 [shape = 'u32[144,128]{1,0:T(1,128)}', space=vmem, size = 0x12000, scoped, tag = 'internal scratch']
  #allocation2 [shape = 'f32[8,128]{1,0:T(8,128)}', space=vmem, size = 0x1000, scoped, tag = 'scratch operand']
  %s0 = inlined_call_operand.hbm [shape: f32[8,128], index: 0, kind: input, shape index: {}]
  %s1 = inlined_call_operand.hbm [shape: f32[4,128,128], index: 1, kind: input, shape index: {}]
  %s2 = inlined_call_operand.hbm [shape: f32[4,1,128], index: 2, kind: input, shape index: {}]
  %s3 = inlined_call_operand.hbm [shape: f32[8,128], index: 3, kind: output, shape index: {}]
  %s4 = sld [smem:[#allocation0]]
  $region34: #{tpu_custom_call.1} parent=0
    _
  %s6 = ssub.s32 1, %s4
  %s7 = scalar_select 0, %s6, %s4
  $region1: #{tpu_custom_call.1} parent=0
    #allocation3 [shape = 'u8[4096]{0}', space=vmem, size = 0x1000, scoped, tag = 'input window, operand 0, single buffered']
    #allocation4 [shape = 's32[1]{0}', space=sflag, size = 0x4, scoped, tag = 'scoped memory for tpu_custom_call.1']
    #allocation5 [shape = 's32[1]{0}', space=sflag, size = 0x4, scoped, tag = 'scoped memory for tpu_custom_call.1']
    #allocation6 [shape = 'u8[262144]{0}', space=vmem, size = 0x40000, scoped, tag = 'input window, operand 1, single buffered']
    #allocation7 [shape = 's32[1]{0}', space=sflag, size = 0x4, scoped, tag = 'scoped memory for tpu_custom_call.1']
    #allocation8 [shape = 'u8[2048]{0}', space=vmem, size = 0x800, scoped, tag = 'input window, operand 2, single buffered']
    #allocation9 [shape = 'u8[4096]{0}', space=vmem, size = 0x1000, scoped, tag = 'output window, operand 0, single buffered']
    %8 = vsyncpa [#allocation4], 0
    %9 = vsyncpa [#allocation7], 0
    %10 = vsyncpa [#allocation5], 0
    // Predicated region
    $region2: #{tpu_custom_call.1} parent=1 // pred_check
      _
    $region3: #{tpu_custom_call.1} parent=1 // pred_check_branch
      %12 = sbr.rel (0) target = $region5
    $region4: #{tpu_custom_call.1} parent=1 // pred_region
      %s14 = ssub.s32 128, 128
      %15 = vsyncadd [#allocation4], %s14
      %s17 = sshll.u32 [#allocation3], 4
      %s18 = int_to_ptr.vmem [resolvable:$true] %s17
      %20 = dma.hbm_to_vmem [thread:$0]  %s0, 128, %s18, [#allocation4]
    $region5: #{tpu_custom_call.1} parent=1 // pred_fallthru
      _
    // Predicated region
    $region6: #{tpu_custom_call.1} parent=1 // pred_check
      _
    $region7: #{tpu_custom_call.1} parent=1 // pred_check_branch
      %22 = sbr.rel (0) target = $region9
    $region8: #{tpu_custom_call.1} parent=1 // pred_region
      %s24 = ssub.s32 8192, 8192
      %25 = vsyncadd [#allocation7], %s24
      %s26 = sshll.u32 [#allocation6], 4
      %s27 = int_to_ptr.vmem [resolvable:$true] %s26
      %32 = dma.hbm_to_vmem [thread:$0]  %s1, 8192, %s27, [#allocation7], 128, 128, 8
    $region9: #{tpu_custom_call.1} parent=1 // pred_fallthru
      _
    // Predicated region
    $region10: #{tpu_custom_call.1} parent=1 // pred_check
      _
    $region11: #{tpu_custom_call.1} parent=1 // pred_check_branch
      %34 = sbr.rel (0) target = $region13
    $region12: #{tpu_custom_call.1} parent=1 // pred_region
      %s36 = ssub.s32 64, 64
      %37 = vsyncadd [#allocation7], %s36
      %s38 = sshll.u32 [#allocation8], 4
      %s39 = int_to_ptr.vmem [resolvable:$true] %s38
      %44 = dma.hbm_to_vmem [thread:$0]  %s2, 64, %s39, [#allocation7], 16, 16, 1
    $region13: #{tpu_custom_call.1} parent=1 // pred_fallthru
      _
    // Predicated region
    $region14: #{tpu_custom_call.1} parent=1 // pred_check
      _
    $region15: #{tpu_custom_call.1} parent=1 // pred_check_branch
      %46 = sbr.rel (0) target = $region17
    $region16: #{tpu_custom_call.1} parent=1 // pred_region
      %47 = dma.done [#allocation4], 128
    $region17: #{tpu_custom_call.1} parent=1 // pred_fallthru
      _
    // Predicated region
    $region18: #{tpu_custom_call.1} parent=1 // pred_check
      _
    $region19: #{tpu_custom_call.1} parent=1 // pred_check_branch
      %49 = sbr.rel (0) target = $region21
    $region20: #{tpu_custom_call.1} parent=1 // pred_region
      %50 = dma.done [#allocation7], 8192
    $region21: #{tpu_custom_call.1} parent=1 // pred_fallthru
      _
    // Predicated region
    $region22: #{tpu_custom_call.1} parent=1 // pred_check
      _
    $region23: #{tpu_custom_call.1} parent=1 // pred_check_branch
      %52 = sbr.rel (0) target = $region25
    $region24: #{tpu_custom_call.1} parent=1 // pred_region
      %53 = dma.done [#allocation7], 64
    $region25: #{tpu_custom_call.1} parent=1 // pred_fallthru
      _
    %v54 = vld [vmem:[#allocation3] sm:$0xff]
    %55 = vst [vmem:[#allocation2] sm:$0xff] %v54
    %v56 = vld [vmem:[#allocation2] sm:$0xff]
    %v57 = vld [vmem:[#allocation6] sm:$0xff]
    %v58 = vld [vmem:[#allocation6 + $0x8] sm:$0xff]
    %v59 = vld [vmem:[#allocation6 + $0x10] sm:$0xff]
    %v60 = vld [vmem:[#allocation6 + $0x18] sm:$0xff]
    %v61 = vld [vmem:[#allocation6 + $0x20] sm:$0xff]
    %v62 = vld [vmem:[#allocation6 + $0x28] sm:$0xff]
    %v63 = vld [vmem:[#allocation6 + $0x30] sm:$0xff]
    %v64 = vld [vmem:[#allocation6 + $0x38] sm:$0xff]
    %v65 = vld [vmem:[#allocation6 + $0x40] sm:$0xff]
    %v66 = vld [vmem:[#allocation6 + $0x48] sm:$0xff]
    %v67 = vld [vmem:[#allocation6 + $0x50] sm:$0xff]
    %v68 = vld [vmem:[#allocation6 + $0x58] sm:$0xff]
    %v69 = vld [vmem:[#allocation6 + $0x60] sm:$0xff]
    %v70 = vld [vmem:[#allocation6 + $0x68] sm:$0xff]
    %v71 = vld [vmem:[#allocation6 + $0x70] sm:$0xff]
    %v72 = vld [vmem:[#allocation6 + $0x78] sm:$0xff]
    %v73 = vld [vmem:[#allocation8] sm:$0x1]
    %v75 = vlaneseq
    %v76 = vshrl.u32 %v75, 7
    %v77 = vsub.s32 0, %v76
    %v78 = vrot.slane %v73, %v77
    %80 = vmatprep.subr.mxu0 0.0
    %81 = vmatpush1.msra.mxu0 %v72
    %82 = vmatprep.subr.mxu0 0.0
    %83 = vmatpush1.msra.mxu0 %v71
    %84 = vmatprep.subr.mxu0 0.0
    %85 = vmatpush1.msra.mxu0 %v70
    %86 = vmatprep.subr.mxu0 0.0
    %87 = vmatpush1.msra.mxu0 %v69
    %88 = vmatprep.subr.mxu0 0.0
    %89 = vmatpush1.msra.mxu0 %v68
    %90 = vmatprep.subr.mxu0 0.0
    %91 = vmatpush1.msra.mxu0 %v67
    %92 = vmatprep.subr.mxu0 0.0
    %93 = vmatpush1.msra.mxu0 %v66
    %94 = vmatprep.subr.mxu0 0.0
    %95 = vmatpush1.msra.mxu0 %v65
    %96 = vmatprep.subr.mxu0 0.0
    %97 = vmatpush1.msra.mxu0 %v64
    %98 = vmatprep.subr.mxu0 0.0
    %99 = vmatpush1.msra.mxu0 %v63
    %100 = vmatprep.subr.mxu0 0.0
    %101 = vmatpush1.msra.mxu0 %v62
    %102 = vmatprep.subr.mxu0 0.0
    %103 = vmatpush1.msra.mxu0 %v61
    %104 = vmatprep.subr.mxu0 0.0
    %105 = vmatpush1.msra.mxu0 %v60
    %106 = vmatprep.subr.mxu0 0.0
    %107 = vmatpush1.msra.mxu0 %v59
    %108 = vmatprep.subr.mxu0 0.0
    %109 = vmatpush1.msra.mxu0 %v58
    %110 = vmatprep.subr.mxu0 0.0
    %111 = vmatpush1.msra.mxu0 %v57
    %112 = vmatprep.subr.mxu0 0.0
    %113 = vmatpush2.msra.mxu0 0.0
    %114 = vmatprep.subr.mxu0 0.0
    %115 = vmatpush2.msra.mxu0 0.0
    %116 = vmatprep.subr.mxu0 0.0
    %117 = vmatpush2.msra.mxu0 0.0
    %118 = vmatprep.subr.mxu0 0.0
    %119 = vmatpush2.msra.mxu0 0.0
    %120 = vmatprep.subr.mxu0 0.0
    %121 = vmatpush2.msra.mxu0 0.0
    %122 = vmatprep.subr.mxu0 0.0
    %123 = vmatpush2.msra.mxu0 0.0
    %124 = vmatprep.subr.mxu0 0.0
    %125 = vmatpush2.msra.mxu0 0.0
    %126 = vmatprep.subr.mxu0 0.0
    %127 = vmatpush2.msra.mxu0 0.0
    %128 = vmatprep.subr.mxu0 0.0
    %129 = vmatpush2.msra.mxu0 0.0
    %130 = vmatprep.subr.mxu0 0.0
    %131 = vmatpush2.msra.mxu0 0.0
    %132 = vmatprep.subr.mxu0 0.0
    %133 = vmatpush2.msra.mxu0 0.0
    %134 = vmatprep.subr.mxu0 0.0
    %135 = vmatpush2.msra.mxu0 0.0
    %136 = vmatprep.subr.mxu0 0.0
    %137 = vmatpush2.msra.mxu0 0.0
    %138 = vmatprep.subr.mxu0 0.0
    %139 = vmatpush2.msra.mxu0 0.0
    %140 = vmatprep.subr.mxu0 0.0
    %141 = vmatpush2.msra.mxu0 0.0
    %142 = vmatprep.subr.mxu0 0.0
    %143 = vmatpush2.msra.mxu0 0.0
    %144 = vmatprep.mubr.f32.mxu0 0.0
    %145 = vmatmul.mubr.f32.gmra.mxu0 %v56
    %v146 = vpop.f32.mrf.mxu0
    %v147 = vadd.f32 %v78, %v146
    %v148 = vpop.f32.mrf.mxu0
    %149 = vdwg.mxu0
    %v150 = vmax.f32 %v147, 0.0
    %151 = vst [vmem:[#allocation2] sm:$0xff] %v150
    %v152 = vld [vmem:[#allocation2] sm:$0xff]
    %s153 = scalar_lea.vmem [#allocation6], 128
    %v154 = vld [vmem:[%s153] sm:$0xff]
    %v155 = vld [vmem:[%s153 + $0x8] sm:$0xff]
    %v156 = vld [vmem:[%s153 + $0x10] sm:$0xff]
    %v157 = vld [vmem:[%s153 + $0x18] sm:$0xff]
    %v158 = vld [vmem:[%s153 + $0x20] sm:$0xff]
    %v159 = vld [vmem:[%s153 + $0x28] sm:$0xff]
    %v160 = vld [vmem:[%s153 + $0x30] sm:$0xff]
    %v161 = vld [vmem:[%s153 + $0x38] sm:$0xff]
    %v162 = vld [vmem:[%s153 + $0x40] sm:$0xff]
    %v163 = vld [vmem:[%s153 + $0x48] sm:$0xff]
    %v164 = vld [vmem:[%s153 + $0x50] sm:$0xff]
    %v165 = vld [vmem:[%s153 + $0x58] sm:$0xff]
    %v166 = vld [vmem:[%s153 + $0x60] sm:$0xff]
    %v167 = vld [vmem:[%s153 + $0x68] sm:$0xff]
    %v168 = vld [vmem:[%s153 + $0x70] sm:$0xff]
    %v169 = vld [vmem:[%s153 + $0x78] sm:$0xff]
    %s170 = scalar_lea.vmem [#allocation8], 1
    %v171 = vld [vmem:[%s170] sm:$0x1]
    %v173 = vlaneseq
    %v174 = vshrl.u32 %v173, 7
    %v175 = vsub.s32 0, %v174
    %v176 = vrot.slane %v171, %v175
    %178 = vmatprep.subr.mxu0 0.0
    %179 = vmatpush1.msra.mxu0 %v169
    %180 = vmatprep.subr.mxu0 0.0
    %181 = vmatpush1.msra.mxu0 %v168
    %182 = vmatprep.subr.mxu0 0.0
    %183 = vmatpush1.msra.mxu0 %v167
    %184 = vmatprep.subr.mxu0 0.0
    %185 = vmatpush1.msra.mxu0 %v166
    %186 = vmatprep.subr.mxu0 0.0
    %187 = vmatpush1.msra.mxu0 %v165
    %188 = vmatprep.subr.mxu0 0.0
    %189 = vmatpush1.msra.mxu0 %v164
    %190 = vmatprep.subr.mxu0 0.0
    %191 = vmatpush1.msra.mxu0 %v163
    %192 = vmatprep.subr.mxu0 0.0
    %193 = vmatpush1.msra.mxu0 %v162
    %194 = vmatprep.subr.mxu0 0.0
    %195 = vmatpush1.msra.mxu0 %v161
    %196 = vmatprep.subr.mxu0 0.0
    %197 = vmatpush1.msra.mxu0 %v160
    %198 = vmatprep.subr.mxu0 0.0
    %199 = vmatpush1.msra.mxu0 %v159
    %200 = vmatprep.subr.mxu0 0.0
    %201 = vmatpush1.msra.mxu0 %v158
    %202 = vmatprep.subr.mxu0 0.0
    %203 = vmatpush1.msra.mxu0 %v157
    %204 = vmatprep.subr.mxu0 0.0
    %205 = vmatpush1.msra.mxu0 %v156
    %206 = vmatprep.subr.mxu0 0.0
    %207 = vmatpush1.msra.mxu0 %v155
    %208 = vmatprep.subr.mxu0 0.0
    %209 = vmatpush1.msra.mxu0 %v154
    %210 = vmatprep.subr.mxu0 0.0
    %211 = vmatpush2.msra.mxu0 0.0
    %212 = vmatprep.subr.mxu0 0.0
    %213 = vmatpush2.msra.mxu0 0.0
    %214 = vmatprep.subr.mxu0 0.0
    %215 = vmatpush2.msra.mxu0 0.0
    %216 = vmatprep.subr.mxu0 0.0
    %217 = vmatpush2.msra.mxu0 0.0
    %218 = vmatprep.subr.mxu0 0.0
    %219 = vmatpush2.msra.mxu0 0.0
    %220 = vmatprep.subr.mxu0 0.0
    %221 = vmatpush2.msra.mxu0 0.0
    %222 = vmatprep.subr.mxu0 0.0
    %223 = vmatpush2.msra.mxu0 0.0
    %224 = vmatprep.subr.mxu0 0.0
    %225 = vmatpush2.msra.mxu0 0.0
    %226 = vmatprep.subr.mxu0 0.0
    %227 = vmatpush2.msra.mxu0 0.0
    %228 = vmatprep.subr.mxu0 0.0
    %229 = vmatpush2.msra.mxu0 0.0
    %230 = vmatprep.subr.mxu0 0.0
    %231 = vmatpush2.msra.mxu0 0.0
    %232 = vmatprep.subr.mxu0 0.0
    %233 = vmatpush2.msra.mxu0 0.0
    %234 = vmatprep.subr.mxu0 0.0
    %235 = vmatpush2.msra.mxu0 0.0
    %236 = vmatprep.subr.mxu0 0.0
    %237 = vmatpush2.msra.mxu0 0.0
    %238 = vmatprep.subr.mxu0 0.0
    %239 = vmatpush2.msra.mxu0 0.0
    %240 = vmatprep.subr.mxu0 0.0
    %241 = vmatpush2.msra.mxu0 0.0
    %242 = vmatprep.mubr.f32.mxu0 0.0
    %243 = vmatmul.mubr.f32.gmra.mxu0 %v152
    %v244 = vpop.f32.mrf.mxu0
    %v245 = vadd.f32 %v176, %v244
    %v246 = vpop.f32.mrf.mxu0
    %247 = vdwg.mxu0
    %v248 = vmax.f32 %v245, 0.0
    %249 = vst [vmem:[#allocation2] sm:$0xff] %v248
    %v250 = vld [vmem:[#allocation2] sm:$0xff]
    %s251 = scalar_lea.vmem [#allocation6], 256
    %v252 = vld [vmem:[%s251] sm:$0xff]
    %v253 = vld [vmem:[%s251 + $0x8] sm:$0xff]
    %v254 = vld [vmem:[%s251 + $0x10] sm:$0xff]
    %v255 = vld [vmem:[%s251 + $0x18] sm:$0xff]
    %v256 = vld [vmem:[%s251 + $0x20] sm:$0xff]
    %v257 = vld [vmem:[%s251 + $0x28] sm:$0xff]
    %v258 = vld [vmem:[%s251 + $0x30] sm:$0xff]
    %v259 = vld [vmem:[%s251 + $0x38] sm:$0xff]
    %v260 = vld [vmem:[%s251 + $0x40] sm:$0xff]
    %v261 = vld [vmem:[%s251 + $0x48] sm:$0xff]
    %v262 = vld [vmem:[%s251 + $0x50] sm:$0xff]
    %v263 = vld [vmem:[%s251 + $0x58] sm:$0xff]
    %v264 = vld [vmem:[%s251 + $0x60] sm:$0xff]
    %v265 = vld [vmem:[%s251 + $0x68] sm:$0xff]
    %v266 = vld [vmem:[%s251 + $0x70] sm:$0xff]
    %v267 = vld [vmem:[%s251 + $0x78] sm:$0xff]
    %s268 = scalar_lea.vmem [#allocation8], 2
    %v269 = vld [vmem:[%s268] sm:$0x1]
    %v271 = vlaneseq
    %v272 = vshrl.u32 %v271, 7
    %v273 = vsub.s32 0, %v272
    %v274 = vrot.slane %v269, %v273
    %276 = vmatprep.subr.mxu0 0.0
    %277 = vmatpush1.msra.mxu0 %v267
    %278 = vmatprep.subr.mxu0 0.0
    %279 = vmatpush1.msra.mxu0 %v266
    %280 = vmatprep.subr.mxu0 0.0
    %281 = vmatpush1.msra.mxu0 %v265
    %282 = vmatprep.subr.mxu0 0.0
    %283 = vmatpush1.msra.mxu0 %v264
    %284 = vmatprep.subr.mxu0 0.0
    %285 = vmatpush1.msra.mxu0 %v263
    %286 = vmatprep.subr.mxu0 0.0
    %287 = vmatpush1.msra.mxu0 %v262
    %288 = vmatprep.subr.mxu0 0.0
    %289 = vmatpush1.msra.mxu0 %v261
    %290 = vmatprep.subr.mxu0 0.0
    %291 = vmatpush1.msra.mxu0 %v260
    %292 = vmatprep.subr.mxu0 0.0
    %293 = vmatpush1.msra.mxu0 %v259
    %294 = vmatprep.subr.mxu0 0.0
    %295 = vmatpush1.msra.mxu0 %v258
    %296 = vmatprep.subr.mxu0 0.0
    %297 = vmatpush1.msra.mxu0 %v257
    %298 = vmatprep.subr.mxu0 0.0
    %299 = vmatpush1.msra.mxu0 %v256
    %300 = vmatprep.subr.mxu0 0.0
    %301 = vmatpush1.msra.mxu0 %v255
    %302 = vmatprep.subr.mxu0 0.0
    %303 = vmatpush1.msra.mxu0 %v254
    %304 = vmatprep.subr.mxu0 0.0
    %305 = vmatpush1.msra.mxu0 %v253
    %306 = vmatprep.subr.mxu0 0.0
    %307 = vmatpush1.msra.mxu0 %v252
    %308 = vmatprep.subr.mxu0 0.0
    %309 = vmatpush2.msra.mxu0 0.0
    %310 = vmatprep.subr.mxu0 0.0
    %311 = vmatpush2.msra.mxu0 0.0
    %312 = vmatprep.subr.mxu0 0.0
    %313 = vmatpush2.msra.mxu0 0.0
    %314 = vmatprep.subr.mxu0 0.0
    %315 = vmatpush2.msra.mxu0 0.0
    %316 = vmatprep.subr.mxu0 0.0
    %317 = vmatpush2.msra.mxu0 0.0
    %318 = vmatprep.subr.mxu0 0.0
    %319 = vmatpush2.msra.mxu0 0.0
    %320 = vmatprep.subr.mxu0 0.0
    %321 = vmatpush2.msra.mxu0 0.0
    %322 = vmatprep.subr.mxu0 0.0
    %323 = vmatpush2.msra.mxu0 0.0
    %324 = vmatprep.subr.mxu0 0.0
    %325 = vmatpush2.msra.mxu0 0.0
    %326 = vmatprep.subr.mxu0 0.0
    %327 = vmatpush2.msra.mxu0 0.0
    %328 = vmatprep.subr.mxu0 0.0
    %329 = vmatpush2.msra.mxu0 0.0
    %330 = vmatprep.subr.mxu0 0.0
    %331 = vmatpush2.msra.mxu0 0.0
    %332 = vmatprep.subr.mxu0 0.0
    %333 = vmatpush2.msra.mxu0 0.0
    %334 = vmatprep.subr.mxu0 0.0
    %335 = vmatpush2.msra.mxu0 0.0
    %336 = vmatprep.subr.mxu0 0.0
    %337 = vmatpush2.msra.mxu0 0.0
    %338 = vmatprep.subr.mxu0 0.0
    %339 = vmatpush2.msra.mxu0 0.0
    %340 = vmatprep.mubr.f32.mxu0 0.0
    %341 = vmatmul.mubr.f32.gmra.mxu0 %v250
    %v342 = vpop.f32.mrf.mxu0
    %v343 = vadd.f32 %v274, %v342
    %v344 = vpop.f32.mrf.mxu0
    %345 = vdwg.mxu0
    %v346 = vmax.f32 %v343, 0.0
    %347 = vst [vmem:[#allocation2] sm:$0xff] %v346
    %v348 = vld [vmem:[#allocation2] sm:$0xff]
    %s349 = scalar_lea.vmem [#allocation6], 384
    %v350 = vld [vmem:[%s349] sm:$0xff]
    %v351 = vld [vmem:[%s349 + $0x8] sm:$0xff]
    %v352 = vld [vmem:[%s349 + $0x10] sm:$0xff]
    %v353 = vld [vmem:[%s349 + $0x18] sm:$0xff]
    %v354 = vld [vmem:[%s349 + $0x20] sm:$0xff]
    %v355 = vld [vmem:[%s349 + $0x28] sm:$0xff]
    %v356 = vld [vmem:[%s349 + $0x30] sm:$0xff]
    %v357 = vld [vmem:[%s349 + $0x38] sm:$0xff]
    %v358 = vld [vmem:[%s349 + $0x40] sm:$0xff]
    %v359 = vld [vmem:[%s349 + $0x48] sm:$0xff]
    %v360 = vld [vmem:[%s349 + $0x50] sm:$0xff]
    %v361 = vld [vmem:[%s349 + $0x58] sm:$0xff]
    %v362 = vld [vmem:[%s349 + $0x60] sm:$0xff]
    %v363 = vld [vmem:[%s349 + $0x68] sm:$0xff]
    %v364 = vld [vmem:[%s349 + $0x70] sm:$0xff]
    %v365 = vld [vmem:[%s349 + $0x78] sm:$0xff]
    %s366 = scalar_lea.vmem [#allocation8], 3
    %v367 = vld [vmem:[%s366] sm:$0x1]
    %v369 = vlaneseq
    %v370 = vshrl.u32 %v369, 7
    %v371 = vsub.s32 0, %v370
    %v372 = vrot.slane %v367, %v371
    %374 = vmatprep.subr.mxu0 0.0
    %375 = vmatpush1.msra.mxu0 %v365
    %376 = vmatprep.subr.mxu0 0.0
    %377 = vmatpush1.msra.mxu0 %v364
    %378 = vmatprep.subr.mxu0 0.0
    %379 = vmatpush1.msra.mxu0 %v363
    %380 = vmatprep.subr.mxu0 0.0
    %381 = vmatpush1.msra.mxu0 %v362
    %382 = vmatprep.subr.mxu0 0.0
    %383 = vmatpush1.msra.mxu0 %v361
    %384 = vmatprep.subr.mxu0 0.0
    %385 = vmatpush1.msra.mxu0 %v360
    %386 = vmatprep.subr.mxu0 0.0
    %387 = vmatpush1.msra.mxu0 %v359
    %388 = vmatprep.subr.mxu0 0.0
    %389 = vmatpush1.msra.mxu0 %v358
    %390 = vmatprep.subr.mxu0 0.0
    %391 = vmatpush1.msra.mxu0 %v357
    %392 = vmatprep.subr.mxu0 0.0
    %393 = vmatpush1.msra.mxu0 %v356
    %394 = vmatprep.subr.mxu0 0.0
    %395 = vmatpush1.msra.mxu0 %v355
    %396 = vmatprep.subr.mxu0 0.0
    %397 = vmatpush1.msra.mxu0 %v354
    %398 = vmatprep.subr.mxu0 0.0
    %399 = vmatpush1.msra.mxu0 %v353
    %400 = vmatprep.subr.mxu0 0.0
    %401 = vmatpush1.msra.mxu0 %v352
    %402 = vmatprep.subr.mxu0 0.0
    %403 = vmatpush1.msra.mxu0 %v351
    %404 = vmatprep.subr.mxu0 0.0
    %405 = vmatpush1.msra.mxu0 %v350
    %406 = vmatprep.subr.mxu0 0.0
    %407 = vmatpush2.msra.mxu0 0.0
    %408 = vmatprep.subr.mxu0 0.0
    %409 = vmatpush2.msra.mxu0 0.0
    %410 = vmatprep.subr.mxu0 0.0
    %411 = vmatpush2.msra.mxu0 0.0
    %412 = vmatprep.subr.mxu0 0.0
    %413 = vmatpush2.msra.mxu0 0.0
    %414 = vmatprep.subr.mxu0 0.0
    %415 = vmatpush2.msra.mxu0 0.0
    %416 = vmatprep.subr.mxu0 0.0
    %417 = vmatpush2.msra.mxu0 0.0
    %418 = vmatprep.subr.mxu0 0.0
    %419 = vmatpush2.msra.mxu0 0.0
    %420 = vmatprep.subr.mxu0 0.0
    %421 = vmatpush2.msra.mxu0 0.0
    %422 = vmatprep.subr.mxu0 0.0
    %423 = vmatpush2.msra.mxu0 0.0
    %424 = vmatprep.subr.mxu0 0.0
    %425 = vmatpush2.msra.mxu0 0.0
    %426 = vmatprep.subr.mxu0 0.0
    %427 = vmatpush2.msra.mxu0 0.0
    %428 = vmatprep.subr.mxu0 0.0
    %429 = vmatpush2.msra.mxu0 0.0
    %430 = vmatprep.subr.mxu0 0.0
    %431 = vmatpush2.msra.mxu0 0.0
    %432 = vmatprep.subr.mxu0 0.0
    %433 = vmatpush2.msra.mxu0 0.0
    %434 = vmatprep.subr.mxu0 0.0
    %435 = vmatpush2.msra.mxu0 0.0
    %436 = vmatprep.subr.mxu0 0.0
    %437 = vmatpush2.msra.mxu0 0.0
    %438 = vmatprep.mubr.f32.mxu0 0.0
    %439 = vmatmul.mubr.f32.gmra.mxu0 %v348
    %v440 = vpop.f32.mrf.mxu0
    %v441 = vadd.f32 %v372, %v440
    %v442 = vpop.f32.mrf.mxu0
    %443 = vdwg.mxu0
    %444 = vst [vmem:[#allocation9] sm:$0xff] %v441
    // Predicated region
    $region26: #{tpu_custom_call.1} parent=1 // pred_check
      _
    $region27: #{tpu_custom_call.1} parent=1 // pred_check_branch
      %446 = sbr.rel (0) target = $region29
    $region28: #{tpu_custom_call.1} parent=1 // pred_region
      %s448 = ssub.s32 128, 128
      %449 = vsyncadd [#allocation5], %s448
      %s451 = sshll.u32 [#allocation9], 4
      %s452 = int_to_ptr.vmem [resolvable:$true] %s451
      %454 = dma.vmem_to_hbm [thread:$0]  %s452, 128, %s3, [#allocation5]
    $region29: #{tpu_custom_call.1} parent=1 // pred_fallthru
      _
    // Predicated region
    $region30: #{tpu_custom_call.1} parent=1 // pred_check
      _
    $region31: #{tpu_custom_call.1} parent=1 // pred_check_branch
      %456 = sbr.rel (0) target = $region33
    $region32: #{tpu_custom_call.1} parent=1 // pred_region
      %457 = dma.done [#allocation5], 128
    $region33: #{tpu_custom_call.1} parent=1 // pred_fallthru
      _
    %458 = vsyncpa [#allocation4], 1
    %459 = vsyncpa [#allocation7], 1
    %460 = vsyncpa [#allocation5], 1

</llo_original>
